<compile_context>
chip_gen: v6e
topology: v6e:2x2x1
jax: 0.10.0
libtpu: 0.0.40
codegen_flags: <defaults>
</compile_context>

<pallas_src>
import functools

import jax
import jax.numpy as jnp
from jax.experimental import pallas as pl
from jax.experimental.pallas import tpu as pltpu


def _affine_grid_kernel(theta_ref, out_ref, *, height, width, tile_h):
    """One grid step = (batch b, H-tile ht).

    theta_ref : (B*6,) float32 in SMEM  (row-major flattening of (B, 2, 3))
    out_ref   : (1, tile_h, 2*W) float32 in VMEM (lane-dense, y/x interleaved)
    """
    b = pl.program_id(0)
    ht = pl.program_id(1)

    base = b * 6
    t00 = theta_ref[base + 0]
    t01 = theta_ref[base + 1]
    t02 = theta_ref[base + 2]
    t10 = theta_ref[base + 3]
    t11 = theta_ref[base + 4]
    t12 = theta_ref[base + 5]

    lanes = 2 * width
    # Guard H==1 / W==1 (the PyTorch reference would raise ZeroDivisionError).
    y_scale = 2.0 / max(height - 1, 1)
    x_scale = 2.0 / max(width - 1, 1)

    row = jax.lax.broadcasted_iota(jnp.int32, (tile_h, lanes), 0) + ht * tile_h
    col = jax.lax.broadcasted_iota(jnp.int32, (tile_h, lanes), 1)

    y = -1.0 + row.astype(jnp.float32) * y_scale            # height coordinate
    x = -1.0 + (col >> 1).astype(jnp.float32) * x_scale     # width coordinate
    is_y = (col & 1) == 0                                    # even lane -> y out

    coef_y = jnp.where(is_y, t00, t10)
    coef_x = jnp.where(is_y, t01, t11)
    bias = jnp.where(is_y, t02, t12)

    out_ref[0] = coef_y * y + coef_x * x + bias


def _choose_tile_h(height, width):
    """Pick a TILE_H so one output block (tile_h, 2W) f32 is ~2 MiB."""
    row_bytes = 2 * width * 4
    target_rows = max(8, (1 << 21) // max(row_bytes, 1))
    if height <= target_rows:
        return height                          # full dim -> no (8,128) issue
    return max(8, (target_rows // 8) * 8)      # multiple of 8 sublanes


def affine_grid_gen(theta, height, width):
    """theta: (B, 2, 3) float32  ->  (B, H, W, 2) float32."""
    theta = theta.astype(jnp.float32)
    b = theta.shape[0]
    lanes = 2 * width
    tile_h = _choose_tile_h(height, width)

    theta_flat = theta.reshape(b * 6)          # tiny; lives whole in SMEM

    kernel = functools.partial(
        _affine_grid_kernel, height=height, width=width, tile_h=tile_h)

    out = pl.pallas_call(
        kernel,
        out_shape=jax.ShapeDtypeStruct((b, height, lanes), jnp.float32),
        grid_spec=pltpu.PrefetchScalarGridSpec(
            num_scalar_prefetch=0,
            grid=(b, pl.cdiv(height, tile_h)),
            in_specs=[pl.BlockSpec(memory_space=pltpu.MemorySpace.SMEM)],
            out_specs=pl.BlockSpec((1, tile_h, lanes), lambda i, j: (i, j, 0)),
        ),
        compiler_params=pltpu.CompilerParams(
            dimension_semantics=("parallel", "parallel")),
    )(theta_flat)

    # (B, H, 2W) row-major bytes == (B, H, W, 2) row-major bytes: free reshape.
    return out.reshape(b, height, width, 2)


def _reference(theta, height, width):
    """Pure-JAX reference mirroring the PyTorch AffineGridGenFunction."""
    i = jnp.arange(height, dtype=jnp.float32)
    j = jnp.arange(width, dtype=jnp.float32)
    y = (-1.0 + i / (height - 1) * 2.0)[:, None] * jnp.ones((1, width))
    x = (-1.0 + j / (width - 1) * 2.0)[None, :] * jnp.ones((height, 1))
    ones = jnp.ones((height, width), jnp.float32)
    grid = jnp.stack([y, x, ones], axis=-1)                   # (H, W, 3)
    grid_flat = grid.reshape(height * width, 3)
    out = jnp.einsum("pc,bkc->bpk", grid_flat, theta.astype(jnp.float32))
    return out.reshape(theta.shape[0], height, width, 2)


if __name__ == "__main__":
    B, H, W = 2, 16, 16
    key = jax.random.PRNGKey(0)
    theta = jax.random.normal(key, (B, 2, 3), dtype=jnp.float32)

    out = affine_grid_gen(theta, H, W)
    out = jax.block_until_ready(out)

    ref = _reference(theta, H, W)
    assert out.shape == (B, H, W, 2), out.shape
    assert jnp.allclose(out, ref, atol=1e-5, rtol=1e-5), "mismatch vs reference"

    print("KERNEL_OK")
</pallas_src>

<mosaic_0001>
module attributes {stable_mosaic.version = 11 : i64} {
  func.func @_affine_grid_kernel(%arg0: i32, %arg1: i32, %arg2: memref<12xf32, #tpu.memory_space<smem>>, %arg3: memref<1x16x32xf32, #tpu.memory_space<vmem>>) attributes {dimension_semantics = [#tpu.dimension_semantics<parallel>, #tpu.dimension_semantics<parallel>], iteration_bounds = array<i64: 2, 1>, scalar_prefetch = 0 : i64, scratch_operands = 0 : i64, tpu.core_type = #tpu.core_type<tc>, window_params = [{transform_indices = @transform_0, window_bounds = array<i64: 12>}, {transform_indices = @transform_1, window_bounds = array<i64: 1, 16, 32>}]} {
    %c6_i32 = arith.constant 6 : i32
    %0 = arith.muli %arg0, %c6_i32 : i32
    %c0_i32 = arith.constant 0 : i32
    %1 = arith.addi %0, %c0_i32 : i32
    %2 = arith.index_cast %1 : i32 to index
    %3 = memref.load %arg2[%2] : memref<12xf32, #tpu.memory_space<smem>>
    %c1_i32 = arith.constant 1 : i32
    %4 = arith.addi %0, %c1_i32 : i32
    %5 = arith.index_cast %4 : i32 to index
    %6 = memref.load %arg2[%5] : memref<12xf32, #tpu.memory_space<smem>>
    %c2_i32 = arith.constant 2 : i32
    %7 = arith.addi %0, %c2_i32 : i32
    %8 = arith.index_cast %7 : i32 to index
    %9 = memref.load %arg2[%8] : memref<12xf32, #tpu.memory_space<smem>>
    %c3_i32 = arith.constant 3 : i32
    %10 = arith.addi %0, %c3_i32 : i32
    %11 = arith.index_cast %10 : i32 to index
    %12 = memref.load %arg2[%11] : memref<12xf32, #tpu.memory_space<smem>>
    %c4_i32 = arith.constant 4 : i32
    %13 = arith.addi %0, %c4_i32 : i32
    %14 = arith.index_cast %13 : i32 to index
    %15 = memref.load %arg2[%14] : memref<12xf32, #tpu.memory_space<smem>>
    %c5_i32 = arith.constant 5 : i32
    %16 = arith.addi %0, %c5_i32 : i32
    %17 = arith.index_cast %16 : i32 to index
    %18 = memref.load %arg2[%17] : memref<12xf32, #tpu.memory_space<smem>>
    %19 = tpu.iota {dimensions = array<i32: 0>} : vector<16x32xi32>
    %c16_i32 = arith.constant 16 : i32
    %20 = arith.muli %arg1, %c16_i32 : i32
    %21 = vector.broadcast %20 : i32 to vector<16x32xi32>
    %22 = arith.addi %19, %21 : vector<16x32xi32>
    %23 = tpu.iota {dimensions = array<i32: 1>} : vector<16x32xi32>
    %24 = arith.sitofp %22 : vector<16x32xi32> to vector<16x32xf32>
    %cst = arith.constant 0.13333334 : f32
    %25 = vector.broadcast %cst : f32 to vector<16x32xf32>
    %26 = arith.mulf %24, %25 : vector<16x32xf32>
    %cst_0 = arith.constant -1.000000e+00 : f32
    %27 = vector.broadcast %cst_0 : f32 to vector<16x32xf32>
    %28 = arith.addf %27, %26 : vector<16x32xf32>
    %c1_i32_1 = arith.constant 1 : i32
    %29 = vector.broadcast %c1_i32_1 : i32 to vector<16x32xi32>
    %30 = arith.shrsi %23, %29 : vector<16x32xi32>
    %31 = arith.sitofp %30 : vector<16x32xi32> to vector<16x32xf32>
    %cst_2 = arith.constant 0.13333334 : f32
    %32 = vector.broadcast %cst_2 : f32 to vector<16x32xf32>
    %33 = arith.mulf %31, %32 : vector<16x32xf32>
    %cst_3 = arith.constant -1.000000e+00 : f32
    %34 = vector.broadcast %cst_3 : f32 to vector<16x32xf32>
    %35 = arith.addf %34, %33 : vector<16x32xf32>
    %c1_i32_4 = arith.constant 1 : i32
    %36 = vector.broadcast %c1_i32_4 : i32 to vector<16x32xi32>
    %37 = arith.andi %23, %36 : vector<16x32xi32>
    %c0_i32_5 = arith.constant 0 : i32
    %38 = vector.broadcast %c0_i32_5 : i32 to vector<16x32xi32>
    %39 = arith.cmpi eq, %37, %38 : vector<16x32xi32>
    %40 = vector.broadcast %3 : f32 to vector<16x32xf32>
    %41 = vector.broadcast %12 : f32 to vector<16x32xf32>
    %42 = arith.select %39, %40, %41 : vector<16x32xi1>, vector<16x32xf32>
    %43 = vector.broadcast %6 : f32 to vector<16x32xf32>
    %44 = vector.broadcast %15 : f32 to vector<16x32xf32>
    %45 = arith.select %39, %43, %44 : vector<16x32xi1>, vector<16x32xf32>
    %46 = vector.broadcast %9 : f32 to vector<16x32xf32>
    %47 = vector.broadcast %18 : f32 to vector<16x32xf32>
    %48 = arith.select %39, %46, %47 : vector<16x32xi1>, vector<16x32xf32>
    %49 = arith.mulf %42, %28 : vector<16x32xf32>
    %50 = arith.mulf %45, %35 : vector<16x32xf32>
    %51 = arith.addf %49, %50 : vector<16x32xf32>
    %52 = arith.addf %51, %48 : vector<16x32xf32>
    %c0 = arith.constant 0 : index
    %c0_6 = arith.constant 0 : index
    %c0_7 = arith.constant 0 : index
    %53 = vector.load %arg3[%c0, %c0_6, %c0_7] : memref<1x16x32xf32, #tpu.memory_space<vmem>>, vector<1x16x32xf32>
    %54 = vector.shape_cast %53 : vector<1x16x32xf32> to vector<16x32xf32>
    %55 = vector.shape_cast %52 : vector<16x32xf32> to vector<1x16x32xf32>
    tpu.vector_store %arg3[%c0, %c0_6, %c0_7], %55 {strides = array<i32>} : memref<1x16x32xf32, #tpu.memory_space<vmem>>, vector<1x16x32xf32>,
    return
  }
  func.func @transform_0(%arg0: i32, %arg1: i32) -> i32 {
    %c0_i32 = arith.constant 0 : i32
    %c0_i32_0 = arith.constant 0 : i32
    return %c0_i32 : i32
  }
  func.func @transform_1(%arg0: i32, %arg1: i32) -> (i32, i32, i32) {
    %c0_i32 = arith.constant 0 : i32
    %c0_i32_0 = arith.constant 0 : i32
    return %arg0, %arg1, %c0_i32 : i32, i32, i32
  }
}

</mosaic_0001>

<llo_original>
// kernel: tpu_custom_call.1
$region0: #{tpu_custom_call.1}
  #allocation0 [shape = 'u32[]', space=smem, size = 0x4, offset = 0x4, fixed_abs, tag = 'smem constant byte address 0x4 - core index']
  #allocation1 [shape = 'u32[144,128]{1,0:T(1,128)}', space=vmem, size = 0x12000, scoped, tag = 'internal scratch']
  %s0 = inlined_call_operand.hbm [shape: f32[12], index: 0, kind: input, shape index: {}]
  %s1 = inlined_call_operand.hbm [shape: f32[2,16,32], index: 1, kind: output, shape index: {}]
  %s2 = sld [smem:[#allocation0]]
  $region41: #{tpu_custom_call.1} parent=0
    _
  %s4 = ssub.s32 1, %s2
  %s5 = scalar_select 0, %s4, %s2
  $region1: #{tpu_custom_call.1} parent=0
    #allocation2 [shape = 'u8[512]{0}', space=smem, size = 0x200, scoped, tag = 'input window, operand 0, single buffered']
    #allocation3 [shape = 's32[2]{0}', space=sflag, size = 0x8, scoped, tag = 'scoped memory for tpu_custom_call.1']
    #allocation4 [shape = 's32[2]{0}', space=sflag, size = 0x8, scoped, tag = 'scoped memory for tpu_custom_call.1']
    #allocation5 [shape = 'u8[16384]{0}', space=vmem, size = 0x4000, scoped, tag = 'output window, operand 0']
    %6 = vsyncpa [#allocation4], 0
    %7 = vsyncpa [#allocation3], 0
    %s8 = scalar_lea.sflag [#allocation3], 1
    %9 = vsyncpa %s8, 0
    loop: start=0, step=1, limit=4
    $region2: #{tpu_custom_call.1} parent=1 // loop_pre_header
      _
    $region3: #{tpu_custom_call.1} parent=1 // loop_header
      %s11 = sphi 0, %s15
      %p12 = scmp.ge.s32.totalorder %s11, 4
      %s18 = sphi 0, %s30
      %s19 = sphi 0, %s26
      %s20 = sphi 0, %s18
      %s21 = sphi 0, %s19
      %s22 = sphi 0, %s20
      %s23 = sphi 0, %s21
      %s31 = sphi 0, %s31
      %s33 = sphi 0, %s31
      %s34 = sphi 0, %s33
      %s48 = sphi 0, %s34
      %s56 = sphi 0, %s58
      %s59 = sphi 0, %s56
      %s60 = sphi 0, %s59
      %s76 = sphi 0, %s60
    $region4: #{tpu_custom_call.1} parent=1 // loop_header_branch
      %14 = sbr.rel (%p12) target = $region8
    $region5: #{tpu_custom_call.1} parent=1 // loop_body
      %s16 = ssub.s32 %s11, 1
      %s17 = ssub.s32 %s11, 2
      %s24 = sadd.s32 1, %s19
      %p25 = scmp.ge.s32.totalorder %s24, 1
      %s26 = scalar_select %p25, 0, %s24
      %s27 = sadd.s32 1, %s18
      %s28 = scalar_select %p25, %s27, %s18
      %p29 = scmp.ge.s32.totalorder %s28, 2
      %s30 = scalar_select %p29, 0, %s28
      %s32 = sadd.s32 %s31, 1
      %p35 = scmp.eq.s32.totalorder %s11, 1
      %p36 = scmp.ne.s32.totalorder %s31, %s33
      %p37 = scmp.eq.s32.totalorder %s11, 0
      %p38 = por %p36, %p37
      %p39 = scmp.ne.s32.totalorder %s31, %s33
      %p40 = scmp.eq.s32.totalorder %s16, 1
      %p41 = por %p39, %p40
      %p42 = scmp.ne.s32.totalorder %s33, %s34
      %p43 = scmp.eq.s32.totalorder %s16, 0
      %p44 = por %p42, %p43
      %p45 = scmp.ne.s32.totalorder %s33, %s34
      %p46 = scmp.eq.s32.totalorder %s17, 1
      %p47 = por %p45, %p46
      %p49 = scmp.ne.s32.totalorder %s34, %s48
      %p50 = scmp.eq.s32.totalorder %s17, 0
      %p51 = por %p49, %p50
      %s52 = ssub.s32 %s18, %s30
      %s53 = ssub.s32 %s19, %s26
      %s54 = sor.u32 %s52, %s53
      %p55 = scmp.eq.s32.totalorder %s54, 0
      %s57 = sadd.s32 %s56, 1
      %s58 = scalar_select %p55, %s56, %s57
      %p61 = pneg %p55
      %p62 = scmp.eq.s32.totalorder %s11, 1
      %p63 = por %p61, %p62
      %p64 = scmp.ne.s32.totalorder %s56, %s59
      %p65 = scmp.eq.s32.totalorder %s11, 0
      %p66 = por %p64, %p65
      %p67 = scmp.ne.s32.totalorder %s56, %s59
      %p68 = scmp.eq.s32.totalorder %s16, 1
      %p69 = por %p67, %p68
      %p70 = scmp.ne.s32.totalorder %s59, %s60
      %p71 = scmp.eq.s32.totalorder %s16, 0
      %p72 = por %p70, %p71
      %p73 = scmp.ne.s32.totalorder %s59, %s60
      %p74 = scmp.eq.s32.totalorder %s17, 1
      %p75 = por %p73, %p74
      %p77 = scmp.ne.s32.totalorder %s60, %s76
      %p78 = scmp.eq.s32.totalorder %s17, 0
      %p79 = por %p77, %p78
      %p80 = scmp.le.s32.totalorder 1, %s11
      %p81 = scmp.lt.s32.totalorder %s11, 3
      %p82 = pnand %p80, %p81
      %p83 = pneg %p82
      // Predicated region
      $region9: #{tpu_custom_call.1} parent=5 // pred_check
        _
      $region10: #{tpu_custom_call.1} parent=5 // pred_check_branch
        %85 = sbr.rel (%p82) target = $region12
      $region11: #{tpu_custom_call.1} parent=5 // pred_region
        %s86 = ssub.s32 %s11, 1
        // Predicated region
        $region13: #{tpu_custom_call.1} parent=11 // pred_check
          %p87 = pneg %p44
        $region14: #{tpu_custom_call.1} parent=11 // pred_check_branch
          %89 = sbr.rel (%p87) target = $region16
        $region15: #{tpu_custom_call.1} parent=11 // pred_region
          %s91 = ssub.s32 16, 16
          %92 = vsyncadd [#allocation4], %s91
          %95 = dma.hbm_to_smem %s0, 16, [#allocation2], [#allocation4]
        $region16: #{tpu_custom_call.1} parent=11 // pred_fallthru
          _
      $region12: #{tpu_custom_call.1} parent=5 // pred_fallthru
        _
      %p96 = scmp.lt.s32.totalorder %s11, 2
      // Predicated region
      $region17: #{tpu_custom_call.1} parent=5 // pred_check
        %p97 = pneg %p96
      $region18: #{tpu_custom_call.1} parent=5 // pred_check_branch
        %99 = sbr.rel (%p97) target = $region20
      $region19: #{tpu_custom_call.1} parent=5 // pred_region
        _
      $region20: #{tpu_custom_call.1} parent=5 // pred_fallthru
        _
      %p100 = scmp.le.s32.totalorder 1, %s11
      %p101 = scmp.lt.s32.totalorder %s11, 3
      %p102 = pnand %p100, %p101
      %p103 = pneg %p102
      // Predicated region
      $region21: #{tpu_custom_call.1} parent=5 // pred_check
        _
      $region22: #{tpu_custom_call.1} parent=5 // pred_check_branch
        %105 = sbr.rel (%p102) target = $region24
      $region23: #{tpu_custom_call.1} parent=5 // pred_region
        %s106 = ssub.s32 %s11, 1
        // Predicated region
        $region25: #{tpu_custom_call.1} parent=23 // pred_check
          %p107 = pneg %p44
        $region26: #{tpu_custom_call.1} parent=23 // pred_check_branch
          %109 = sbr.rel (%p107) target = $region28
        $region27: #{tpu_custom_call.1} parent=23 // pred_region
          %110 = dma.done [#allocation4], 16
        $region28: #{tpu_custom_call.1} parent=23 // pred_fallthru
          _
        %111 = sfence
        %p112 = pneg %p44
        %p113 = pneg %p41
        %p114 = pneg %p72
        %p115 = pneg %p69
        %s116 = sand.u32 %s59, 1
        %s117 = scalar_lea.sflag [#allocation3], %s116
        %s118 = sand.u32 %s59, 1
        %s119 = smul.addr %s118, 16
        %s120 = scalar_lea.vmem [#allocation5], %s119
        %s121 = smul.u32 2, %s21
        %s122 = smul.u32 %s20, 6
        %s123 = sld [smem:[#allocation2 + %s122]]
        %s124 = sadd.s32 %s122, 1
        %s125 = sld [smem:[#allocation2 + %s124]]
        %s126 = sadd.s32 %s122, 2
        %s127 = sld [smem:[#allocation2 + %s126]]
        %s128 = sadd.s32 %s122, 3
        %s129 = sld [smem:[#allocation2 + %s128]]
        %s130 = sadd.s32 %s122, 4
        %s131 = sld [smem:[#allocation2 + %s130]]
        %s132 = sadd.s32 %s122, 5
        %s133 = sld [smem:[#allocation2 + %s132]]
        %v134 = vlaneseq
        %v135 = vshrl.u32 %v134, 7
        %v136 = vadd.s32 %v135, 8
        %s137 = smul.u32 %s21, 16
        %v138 = vstv %s137
        %v139 = vadd.s32 %v135, %v138
        %v140 = vadd.s32 %v136, %v138
        %v141 = vlaneseq
        %v142 = vand.u32 %v141, 127
        %v143 = vcvt.s32.f32 %v139
        %v144 = vcvt.s32.f32 %v140
        %v145 = vmul.f32 %v143, 0.13333334
        %v146 = vmul.f32 %v144, 0.13333334
        %v147 = vadd.f32 %v145, -1.0
        %v148 = vadd.f32 %v146, -1.0
        %v149 = vshra.s32 %v142, 1
        %v150 = vcvt.s32.f32 %v149
        %v151 = vmul.f32 %v150, 0.13333334
        %v152 = vadd.f32 %v151, -1.0
        %v153 = vand.u32 %v142, 1
        %vm154 = vcmp.eq.s32.totalorder %v153, 0
        %v155 = vstv %s123
        %v156 = vstv %s129
        %v157 = vsel %vm154, %v155, %v156
        %v158 = vstv %s125
        %v159 = vstv %s131
        %v160 = vsel %vm154, %v158, %v159
        %v161 = vstv %s127
        %v162 = vstv %s133
        %v163 = vsel %vm154, %v161, %v162
        %v164 = vmul.f32 %v157, %v147
        %v165 = vmul.f32 %v157, %v148
        %v166 = vmul.f32 %v160, %v152
        %v167 = vadd.f32 %v164, %v166
        %v168 = vadd.f32 %v165, %v166
        %v169 = vadd.f32 %v167, %v163
        %v170 = vadd.f32 %v168, %v163
        %vm171 = vcmask 261120
        %172 = vst.msk [vmem:[%s120] sm:$0xff] %vm171, %v169
        %173 = vst.msk [vmem:[%s120 + $0x8] sm:$0xff] %vm171, %v170
        %s174 = sand.u32 %s59, 1
        %s175 = scalar_lea.sflag [#allocation3], %s174
        %s176 = sand.u32 %s59, 1
        %s177 = smul.addr %s176, 16
        %s178 = scalar_lea.vmem [#allocation5], %s177
        // Predicated region
        $region29: #{tpu_custom_call.1} parent=23 // pred_check
          %p179 = pneg %p69
        $region30: #{tpu_custom_call.1} parent=23 // pred_check_branch
          %181 = sbr.rel (%p179) target = $region32
        $region31: #{tpu_custom_call.1} parent=23 // pred_region
          %s182 = smul.u32 2, %s21
          %s184 = ssub.s32 256, 256
          %185 = vsyncadd %s175, %s184
          %s186 = smul.addr %s20, 2
          %s187 = sadd.s32 %s182, %s186
          %s188 = smul.addr %s187, 128
          %s189 = scalar_lea.hbm %s1, %s188
          %s190 = sshll.u32 %s178, 4
          %s191 = int_to_ptr.vmem [resolvable:$true] %s190
          %196 = dma.vmem_to_hbm [thread:$0]  %s191, 256, %s189, %s175, 128, 128, 8
        $region32: #{tpu_custom_call.1} parent=23 // pred_fallthru
          _
      $region24: #{tpu_custom_call.1} parent=5 // pred_fallthru
        _
      %p197 = scmp.le.s32.totalorder 2, %s11
      // Predicated region
      $region33: #{tpu_custom_call.1} parent=5 // pred_check
        %p198 = pneg %p197
      $region34: #{tpu_custom_call.1} parent=5 // pred_check_branch
        %200 = sbr.rel (%p198) target = $region36
      $region35: #{tpu_custom_call.1} parent=5 // pred_region
        %s201 = ssub.s32 %s11, 2
        // Predicated region
        $region37: #{tpu_custom_call.1} parent=35 // pred_check
          %p202 = pneg %p75
        $region38: #{tpu_custom_call.1} parent=35 // pred_check_branch
          %204 = sbr.rel (%p202) target = $region40
        $region39: #{tpu_custom_call.1} parent=35 // pred_region
          %s205 = sand.u32 %s60, 1
          %s206 = scalar_lea.sflag [#allocation3], %s205
          %s207 = sand.u32 %s60, 1
          %s208 = smul.addr %s207, 16
          %s209 = scalar_lea.vmem [#allocation5], %s208
          %210 = dma.done %s206, 256
        $region40: #{tpu_custom_call.1} parent=35 // pred_fallthru
          _
      $region36: #{tpu_custom_call.1} parent=5 // pred_fallthru
        _
    $region6: #{tpu_custom_call.1} parent=1 // loop_footer
      %s15 = sadd.s32 1, %s11
    $region7: #{tpu_custom_call.1} parent=1 // loop_footer_branch
      %10 = sbr.rel target = $region3
    $region8: #{tpu_custom_call.1} parent=1 // loop_exit
      _
    %211 = vsyncpa [#allocation3], 1
    %s212 = scalar_lea.sflag [#allocation3], 1
    %213 = vsyncpa %s212, 1
    %214 = vsyncpa [#allocation4], 1
    %s215 = scalar_lea.sflag [#allocation4], 1
    %216 = vsyncpa %s215, 1

</llo_original>
